<compile_context>
chip_gen: v5e
topology: v5e:2x2
jax: 0.10.0
libtpu: 0.0.40
codegen_flags: <defaults>
</compile_context>

<pallas_src>
import functools

import jax
import jax.numpy as jnp
from jax import lax
from jax.experimental import pallas as pl
from jax.experimental.pallas import tpu as pltpu

# ---------------- config (matches the PyTorch module) ----------------
d_model    = 768
vocab_size = 29526
max_len    = 1000
n_segments = 2
LN_EPS     = 1e-5          # torch.nn.LayerNorm default eps


# ---------------- Pallas kernel ----------------
def _make_kernel(row_block, rep, eps):
    """row_block rows of the flattened (B*S, D) output per grid step."""

    def kernel(ids_ref,      # (N,)        int32, scalar-prefetch (SMEM)
               tok_hbm,      # (V, D)      f32,   HBM (pl.ANY) - DMA gathered
               pos_ref,      # (pos_rows,D)f32,   VMEM block
               seg_ref,      # (R, 1)      int32, VMEM block
               segtbl_ref,   # (2, D)      f32
               g_ref,        # (1, D)      f32
               b_ref,        # (1, D)      f32
               o_ref,        # (R, D)      out dtype (bf16)
               tok_buf,      # (R, D)      f32 VMEM scratch (gathered token rows)
               sem):         # DMA semaphore
        row0 = pl.program_id(0) * row_block

        # ---- data-dependent token-row gather: HBM -> VMEM ----
        # Start every row DMA first, then wait for all of them, so the copies
        # overlap instead of serializing per-row DMA latency.
        @pl.loop(0, row_block)
        def _start(r):
            tid = ids_ref[row0 + r]
            pltpu.make_async_copy(tok_hbm.at[pl.ds(tid, 1), :],
                                  tok_buf.at[pl.ds(r, 1), :], sem).start()

        @pl.loop(0, row_block)
        def _wait(r):
            tid = ids_ref[row0 + r]
            pltpu.make_async_copy(tok_hbm.at[pl.ds(tid, 1), :],
                                  tok_buf.at[pl.ds(r, 1), :], sem).wait()

        tok = tok_buf[...]                                   # (R, D) f32
        pos = pos_ref[...]                                   # (pos_rows, D)
        if rep > 1:                                          # tile spans whole sequences
            pos = jnp.tile(pos, (rep, 1))                    # (R, D)

        # Segment gather: n_segments == 2 -> exact 2-way select (VPU only).
        segtbl = segtbl_ref[...]                             # (2, D)
        seg = seg_ref[...]                                   # (R, 1) int32 in {0,1}
        seg_emb = jnp.where(seg > 0, segtbl[1:2, :], segtbl[0:1, :])

        x = tok + pos + seg_emb                              # (R, D) f32

        # LayerNorm over D; stats in f32, var = E[x^2] - mean^2.
        mean = jnp.mean(x, axis=-1, keepdims=True)
        msq  = jnp.mean(x * x, axis=-1, keepdims=True)
        var  = jnp.maximum(msq - mean * mean, 0.0)
        y = (x - mean) * lax.rsqrt(var + eps) * g_ref[...] + b_ref[...]
        o_ref[...] = y.astype(o_ref.dtype)                   # bf16 store (lane-dense)

    return kernel


# ---------------- wrapper ----------------
def _pick_row_block(N, S, target=256):
    """Largest tile (<= target, multiple of 8) dividing N that nests with S
    (divides S or is a multiple of S), preferring a grid of >= 2 steps so both
    v7x TensorCores get work."""
    cands = [rb for rb in (512, 256, 128, 64, 32, 16, 8)
             if rb <= max(target, 8) and N % rb == 0
             and (S % rb == 0 or rb % S == 0)]
    for rb in cands:
        if N // rb >= 2:
            return rb
    return cands[0] if cands else None


@functools.partial(jax.jit, static_argnames=("out_dtype",))
def embedding_forward(params, input_ids, segment_ids, *, out_dtype=jnp.bfloat16):
    """Pallas equivalent of Embedding.forward(x, seg)."""
    B, S = input_ids.shape
    V, D = params["tok_embed"].shape
    NSEG = params["seg_embed"].shape[0]
    assert NSEG == 2, "segment select in the kernel assumes n_segments == 2"
    assert D % 128 == 0, "d_model must be lane-dense (multiple of 128)"
    assert S <= max_len

    N = B * S
    row_block = _pick_row_block(N, S)
    assert row_block is not None and row_block % 8 == 0, \
        "B*S must be tileable into multiple-of-8 row blocks"

    rep = row_block // S if row_block > S else 1       # sequences per tile
    pos_rows = min(row_block, S)                       # pos rows DMA'd per step
    pos_blocks = max(S // row_block, 1)

    ids_flat = input_ids.reshape(N).astype(jnp.int32)          # scalar prefetch
    seg_flat = segment_ids.reshape(N, 1).astype(jnp.int32)
    pos_sl = params["pos_embed"][:S]                            # only needed rows

    if rep > 1 or pos_blocks == 1:
        pos_map = lambda i, ids: (0, 0)                         # constant block
    else:
        pos_map = lambda i, ids: (i % pos_blocks, 0)            # sub-sequence block

    grid = (N // row_block,)

    out = pl.pallas_call(
        _make_kernel(row_block, rep, LN_EPS),
        out_shape=jax.ShapeDtypeStruct((N, D), out_dtype),
        grid_spec=pltpu.PrefetchScalarGridSpec(
            num_scalar_prefetch=1,                              # token ids -> SMEM
            grid=grid,
            in_specs=[
                pl.BlockSpec(memory_space=pl.ANY),              # tok table stays in HBM
                pl.BlockSpec((pos_rows, D), pos_map),           # pos rows for this tile
                pl.BlockSpec((row_block, 1), lambda i, ids: (i, 0)),   # segment ids
                pl.BlockSpec((NSEG, D), lambda i, ids: (0, 0)),        # seg table
                pl.BlockSpec((1, D), lambda i, ids: (0, 0)),           # LN gamma
                pl.BlockSpec((1, D), lambda i, ids: (0, 0)),           # LN beta
            ],
            out_specs=pl.BlockSpec((row_block, D), lambda i, ids: (i, 0)),
            scratch_shapes=[
                pltpu.VMEM((row_block, D), jnp.float32),        # gathered token rows
                pltpu.SemaphoreType.DMA,                        # gather semaphore
            ],
        ),
        compiler_params=pltpu.CompilerParams(
            dimension_semantics=("parallel",),                  # shard over v7x's 2 TCs
            vmem_limit_bytes=32 * 1024 * 1024,
        ),
    )(ids_flat, params["tok_embed"], pos_sl, seg_flat,
      params["seg_embed"], params["ln_g"], params["ln_b"])

    return out.reshape(B, S, D)


# ---------------- params & pure-JAX reference ----------------
def init_params(key):
    k1, k2, k3 = jax.random.split(key, 3)
    return {
        "tok_embed": jax.random.normal(k1, (vocab_size, d_model), jnp.float32),
        "pos_embed": jax.random.normal(k2, (max_len, d_model), jnp.float32),
        "seg_embed": jax.random.normal(k3, (n_segments, d_model), jnp.float32),
        "ln_g": jnp.ones((1, d_model), jnp.float32),
        "ln_b": jnp.zeros((1, d_model), jnp.float32),
    }


def embedding_ref(params, input_ids, segment_ids):
    S = input_ids.shape[1]
    x = (params["tok_embed"][input_ids]
         + params["pos_embed"][:S][None]
         + params["seg_embed"][segment_ids])
    mean = x.mean(-1, keepdims=True)
    var = ((x - mean) ** 2).mean(-1, keepdims=True)
    return (x - mean) / jnp.sqrt(var + LN_EPS) * params["ln_g"][0] + params["ln_b"][0]


# ---------------- main ----------------
if __name__ == "__main__":
    key = jax.random.PRNGKey(0)
    pkey, ikey = jax.random.split(key)
    B, S = 2, 16                                   # small demo batch / seq

    params = init_params(pkey)
    input_ids = jax.random.randint(ikey, (B, S), 1, vocab_size, dtype=jnp.int32)
    input_ids = input_ids.at[:, -3:].set(0)        # trailing PAD tokens
    segment_ids = jnp.concatenate(
        [jnp.zeros((B, S // 2), jnp.int32), jnp.ones((B, S // 2), jnp.int32)],
        axis=1)

    out = embedding_forward(params, input_ids, segment_ids)
    jax.block_until_ready(out)

    ref = embedding_ref(params, input_ids, segment_ids)
    assert out.shape == (B, S, d_model) and out.dtype == jnp.bfloat16
    ok = jnp.allclose(out.astype(jnp.float32), ref, atol=1e-2, rtol=1e-2)
    assert bool(ok), \
        f"max abs err = {float(jnp.max(jnp.abs(out.astype(jnp.float32) - ref)))}"
    print("KERNEL_OK")
</pallas_src>

<mosaic_0001>
module attributes {stable_mosaic.version = 11 : i64} {
  func.func @kernel(%arg0: i32, %arg1: memref<32xi32, #tpu.memory_space<smem>>, %arg2: memref<29526x768xf32, #tpu.memory_space<any>>, %arg3: memref<16x768xf32, #tpu.memory_space<vmem>>, %arg4: memref<16x1xi32, #tpu.memory_space<vmem>>, %arg5: memref<2x768xf32, #tpu.memory_space<vmem>>, %arg6: memref<1x768xf32, #tpu.memory_space<vmem>>, %arg7: memref<1x768xf32, #tpu.memory_space<vmem>>, %arg8: memref<16x768xbf16, #tpu.memory_space<vmem>>, %arg9: memref<16x768xf32, #tpu.memory_space<vmem>>, %arg10: memref<!tpu.dma_semaphore, #tpu.memory_space<semaphore_mem>>) attributes {dimension_semantics = [#tpu.dimension_semantics<parallel>], iteration_bounds = array<i64: 2>, scalar_prefetch = 1 : i64, scratch_operands = 2 : i64, tpu.core_type = #tpu.core_type<tc>, window_params = [{}, {pipeline_mode = #tpu.pipeline_mode<synchronous>, transform_indices = @transform_1, window_bounds = array<i64: 16, 768>}, {transform_indices = @transform_2, window_bounds = array<i64: 16, 1>}, {pipeline_mode = #tpu.pipeline_mode<synchronous>, transform_indices = @transform_3, window_bounds = array<i64: 2, 768>}, {pipeline_mode = #tpu.pipeline_mode<synchronous>, transform_indices = @transform_4, window_bounds = array<i64: 1, 768>}, {pipeline_mode = #tpu.pipeline_mode<synchronous>, transform_indices = @transform_5, window_bounds = array<i64: 1, 768>}, {transform_indices = @transform_6, window_bounds = array<i64: 16, 768>}]} {
    %c16_i32 = arith.constant 16 : i32
    %0 = arith.muli %arg0, %c16_i32 : i32
    %c0_i32 = arith.constant 0 : i32
    %c16_i32_0 = arith.constant 16 : i32
    %1 = arith.addi %c0_i32, %c16_i32_0 : i32
    %c1_i32 = arith.constant 1 : i32
    scf.for %arg11 = %c0_i32 to %1 step %c1_i32  : i32 {
      %c1_i32_25 = arith.constant 1 : i32
      %48 = arith.muli %arg11, %c1_i32_25 : i32
      %c0_i32_26 = arith.constant 0 : i32
      %49 = arith.addi %c0_i32_26, %48 : i32
      %50 = arith.addi %0, %49 : i32
      %51 = arith.index_cast %50 : i32 to index
      %52 = memref.load %arg1[%51] : memref<32xi32, #tpu.memory_space<smem>>
      %c0_i32_27 = arith.constant 0 : i32
      %53 = tpu.memref_slice %arg2[%52, %c0_i32_27] : memref<29526x768xf32, #tpu.memory_space<any>> -> memref<1x768xf32, #tpu.memory_space<any>>
      %c0_i32_28 = arith.constant 0 : i32
      %54 = tpu.memref_slice %arg9[%49, %c0_i32_28] : memref<16x768xf32, #tpu.memory_space<vmem>> -> memref<1x768xf32, #tpu.memory_space<vmem>>
      tpu.enqueue_dma source(%53 : memref<1x768xf32, #tpu.memory_space<any>>) target(%54 : memref<1x768xf32, #tpu.memory_space<vmem>>) target_semaphore(%arg10 : memref<!tpu.dma_semaphore, #tpu.memory_space<semaphore_mem>>)
    }
    %c16_i32_1 = arith.constant 16 : i32
    %c0_i32_2 = arith.constant 0 : i32
    %c16_i32_3 = arith.constant 16 : i32
    %2 = arith.addi %c0_i32_2, %c16_i32_3 : i32
    %c1_i32_4 = arith.constant 1 : i32
    scf.for %arg11 = %c0_i32_2 to %2 step %c1_i32_4  : i32 {
      %c1_i32_25 = arith.constant 1 : i32
      %48 = arith.muli %arg11, %c1_i32_25 : i32
      %c0_i32_26 = arith.constant 0 : i32
      %49 = arith.addi %c0_i32_26, %48 : i32
      %50 = arith.addi %0, %49 : i32
      %51 = arith.index_cast %50 : i32 to index
      %52 = memref.load %arg1[%51] : memref<32xi32, #tpu.memory_space<smem>>
      %c0_i32_27 = arith.constant 0 : i32
      %53 = tpu.memref_slice %arg2[%52, %c0_i32_27] : memref<29526x768xf32, #tpu.memory_space<any>> -> memref<1x768xf32, #tpu.memory_space<any>>
      %c0_i32_28 = arith.constant 0 : i32
      %54 = tpu.memref_slice %arg9[%49, %c0_i32_28] : memref<16x768xf32, #tpu.memory_space<vmem>> -> memref<1x768xf32, #tpu.memory_space<vmem>>
      tpu.wait_dma2 semaphore(%arg10 : memref<!tpu.dma_semaphore, #tpu.memory_space<semaphore_mem>>) src(%53 : memref<1x768xf32, #tpu.memory_space<any>>) dst(%54 : memref<1x768xf32, #tpu.memory_space<vmem>>)
    }
    %c16_i32_5 = arith.constant 16 : i32
    %c0 = arith.constant 0 : index
    %c0_6 = arith.constant 0 : index
    %3 = vector.load %arg9[%c0, %c0_6] : memref<16x768xf32, #tpu.memory_space<vmem>>, vector<16x768xf32>
    %c0_7 = arith.constant 0 : index
    %c0_8 = arith.constant 0 : index
    %4 = vector.load %arg3[%c0_7, %c0_8] : memref<16x768xf32, #tpu.memory_space<vmem>>, vector<16x768xf32>
    %c0_9 = arith.constant 0 : index
    %c0_10 = arith.constant 0 : index
    %5 = vector.load %arg5[%c0_9, %c0_10] : memref<2x768xf32, #tpu.memory_space<vmem>>, vector<2x768xf32>
    %c0_11 = arith.constant 0 : index
    %c0_12 = arith.constant 0 : index
    %6 = vector.load %arg4[%c0_11, %c0_12] : memref<16x1xi32, #tpu.memory_space<vmem>>, vector<16x1xi32>
    %c0_i32_13 = arith.constant 0 : i32
    %7 = vector.broadcast %c0_i32_13 : i32 to vector<16x1xi32>
    %8 = arith.cmpi sgt, %6, %7 : vector<16x1xi32>
    %9 = vector.extract_strided_slice %5 {offsets = [1, 0], sizes = [1, 768], strides = [1, 1]} : vector<2x768xf32> to vector<1x768xf32>
    %10 = vector.extract_strided_slice %5 {offsets = [0, 0], sizes = [1, 768], strides = [1, 1]} : vector<2x768xf32> to vector<1x768xf32>
    %11 = vector.shape_cast %8 : vector<16x1xi1> to vector<16x1xi1>
    %12 = vector.broadcast %11 : vector<16x1xi1> to vector<16x768xi1>
    %13 = vector.shape_cast %9 : vector<1x768xf32> to vector<1x768xf32>
    %14 = vector.broadcast %13 : vector<1x768xf32> to vector<16x768xf32>
    %15 = vector.shape_cast %10 : vector<1x768xf32> to vector<1x768xf32>
    %16 = vector.broadcast %15 : vector<1x768xf32> to vector<16x768xf32>
    %17 = arith.select %12, %14, %16 : vector<16x768xi1>, vector<16x768xf32>
    %18 = arith.addf %3, %4 : vector<16x768xf32>
    %19 = arith.addf %18, %17 : vector<16x768xf32>
    %cst = arith.constant dense<0.000000e+00> : vector<16xf32>
    %20 = vector.multi_reduction <add>, %19, %cst [1] : vector<16x768xf32> to vector<16xf32>
    %21 = vector.shape_cast %20 : vector<16xf32> to vector<16x1xf32>
    %cst_14 = arith.constant 7.680000e+02 : f32
    %22 = vector.broadcast %cst_14 : f32 to vector<16x1xf32>
    %23 = arith.divf %21, %22 : vector<16x1xf32>
    %24 = arith.mulf %19, %19 : vector<16x768xf32>
    %cst_15 = arith.constant dense<0.000000e+00> : vector<16xf32>
    %25 = vector.multi_reduction <add>, %24, %cst_15 [1] : vector<16x768xf32> to vector<16xf32>
    %26 = vector.shape_cast %25 : vector<16xf32> to vector<16x1xf32>
    %cst_16 = arith.constant 7.680000e+02 : f32
    %27 = vector.broadcast %cst_16 : f32 to vector<16x1xf32>
    %28 = arith.divf %26, %27 : vector<16x1xf32>
    %29 = arith.mulf %23, %23 : vector<16x1xf32>
    %30 = arith.subf %28, %29 : vector<16x1xf32>
    %cst_17 = arith.constant 0.000000e+00 : f32
    %31 = vector.broadcast %cst_17 : f32 to vector<16x1xf32>
    %32 = arith.maximumf %30, %31 : vector<16x1xf32>
    %33 = vector.broadcast %23 : vector<16x1xf32> to vector<16x768xf32>
    %34 = arith.subf %19, %33 : vector<16x768xf32>
    %cst_18 = arith.constant 9.99999974E-6 : f32
    %35 = vector.broadcast %cst_18 : f32 to vector<16x1xf32>
    %36 = arith.addf %32, %35 : vector<16x1xf32>
    %37 = math.rsqrt %36 : vector<16x1xf32>
    %38 = vector.broadcast %37 : vector<16x1xf32> to vector<16x768xf32>
    %39 = arith.mulf %34, %38 : vector<16x768xf32>
    %c0_19 = arith.constant 0 : index
    %c0_20 = arith.constant 0 : index
    %40 = vector.load %arg6[%c0_19, %c0_20] : memref<1x768xf32, #tpu.memory_space<vmem>>, vector<1x768xf32>
    %41 = vector.broadcast %40 : vector<1x768xf32> to vector<16x768xf32>
    %42 = arith.mulf %39, %41 : vector<16x768xf32>
    %c0_21 = arith.constant 0 : index
    %c0_22 = arith.constant 0 : index
    %43 = vector.load %arg7[%c0_21, %c0_22] : memref<1x768xf32, #tpu.memory_space<vmem>>, vector<1x768xf32>
    %44 = vector.broadcast %43 : vector<1x768xf32> to vector<16x768xf32>
    %45 = arith.addf %42, %44 : vector<16x768xf32>
    %46 = arith.truncf %45 : vector<16x768xf32> to vector<16x768xbf16>
    %c0_23 = arith.constant 0 : index
    %c0_24 = arith.constant 0 : index
    %47 = vector.load %arg8[%c0_23, %c0_24] : memref<16x768xbf16, #tpu.memory_space<vmem>>, vector<16x768xbf16>
    tpu.vector_store %arg8[%c0_23, %c0_24], %46 {strides = array<i32>} : memref<16x768xbf16, #tpu.memory_space<vmem>>, vector<16x768xbf16>,
    return
  }
  func.func @transform_1(%arg0: i32, %arg1: memref<32xi32, #tpu.memory_space<smem>>) -> (i32, i32) {
    %c0_i32 = arith.constant 0 : i32
    %c0_i32_0 = arith.constant 0 : i32
    %c0_i32_1 = arith.constant 0 : i32
    return %c0_i32, %c0_i32_0 : i32, i32
  }
  func.func @transform_2(%arg0: i32, %arg1: memref<32xi32, #tpu.memory_space<smem>>) -> (i32, i32) {
    %c0_i32 = arith.constant 0 : i32
    %c0_i32_0 = arith.constant 0 : i32
    return %arg0, %c0_i32 : i32, i32
  }
  func.func @transform_3(%arg0: i32, %arg1: memref<32xi32, #tpu.memory_space<smem>>) -> (i32, i32) {
    %c0_i32 = arith.constant 0 : i32
    %c0_i32_0 = arith.constant 0 : i32
    %c0_i32_1 = arith.constant 0 : i32
    return %c0_i32, %c0_i32_0 : i32, i32
  }
  func.func @transform_4(%arg0: i32, %arg1: memref<32xi32, #tpu.memory_space<smem>>) -> (i32, i32) {
    %c0_i32 = arith.constant 0 : i32
    %c0_i32_0 = arith.constant 0 : i32
    %c0_i32_1 = arith.constant 0 : i32
    return %c0_i32, %c0_i32_0 : i32, i32
  }
  func.func @transform_5(%arg0: i32, %arg1: memref<32xi32, #tpu.memory_space<smem>>) -> (i32, i32) {
    %c0_i32 = arith.constant 0 : i32
    %c0_i32_0 = arith.constant 0 : i32
    %c0_i32_1 = arith.constant 0 : i32
    return %c0_i32, %c0_i32_0 : i32, i32
  }
  func.func @transform_6(%arg0: i32, %arg1: memref<32xi32, #tpu.memory_space<smem>>) -> (i32, i32) {
    %c0_i32 = arith.constant 0 : i32
    %c0_i32_0 = arith.constant 0 : i32
    return %arg0, %c0_i32 : i32, i32
  }
}

</mosaic_0001>

<llo_original>
// kernel: embedding_forward.1
$region0: #{embedding_forward.1}
  #allocation0 [shape = 'u32[]', space=smem, size = 0x4, offset = 0x4, fixed_abs, tag = 'smem constant byte address 0x4 - core index']
  #allocation1 [shape = 'u32[72,128]{1,0:T(1,128)}', space=vmem, size = 0x9000, scoped, tag = 'internal scratch']
  #allocation2 [shape = 'f32[16,768]{1,0:T(8,128)}', space=vmem, size = 0xc000, scoped, tag = 'scratch operand']
  #allocation3 [shape = 's32[1]{0}', space=sflag, size = 0x4, scoped, tag = 'scratch operand']
  #allocation4 [shape = 's32[1]{0}', space=sflag, size = 0x4, scoped, tag = 'scoped memory for embedding_forward.1']
  #allocation5 [shape = 'u8[512]{0}', space=smem, size = 0x200, scoped, tag = 'prefetched SMEM operand 0']
  #allocation13 [shape = 's32[]', space=sflag, size = 0x4, offset = 0, fixed_abs, tag = 'sflag constant byte address 0x0 - dummy sync flag']
  %s0 = inlined_call_operand.vmem [shape: s32[32], index: 0, kind: input, shape index: {}]
  %s1 = inlined_call_operand.hbm [shape: f32[29526,768], index: 1, kind: input, shape index: {}]
  %s2 = inlined_call_operand.vmem [shape: f32[16,768], index: 2, kind: input, shape index: {}]
  %s3 = inlined_call_operand.vmem [shape: s32[32,1], index: 3, kind: input, shape index: {}]
  %s4 = inlined_call_operand.hbm [shape: f32[2,768], index: 4, kind: input, shape index: {}]
  %s5 = inlined_call_operand.hbm [shape: f32[1,768], index: 5, kind: input, shape index: {}]
  %s6 = inlined_call_operand.hbm [shape: f32[1,768], index: 6, kind: input, shape index: {}]
  %s7 = inlined_call_operand.hbm [shape: bf16[32,768], index: 7, kind: output, shape index: {}]
  %s8 = sld [smem:[#allocation0]]
  $region79: #{embedding_forward.1} parent=0
    _
  %s10 = ssub.s32 1, %s8
  %s11 = scalar_select 0, %s10, %s8
  %s13 = sshll.u32 %s0, 4
  %s14 = int_to_ptr.vmem [resolvable:$true] %s13
  %16 = dma.vmem_to_smem %s14, 16, [#allocation5], [#allocation4]
  %18 = dma.done [#allocation4], 16
  %19 = sfence
  $region1: #{embedding_forward.1} parent=0
    #allocation6 [shape = 'u8[6144]{0}', space=vmem, size = 0x1800, scoped, tag = 'input window, operand 4, single buffered']
    #allocation7 [shape = 's32[2]{0}', space=sflag, size = 0x8, scoped, tag = 'scoped memory for embedding_forward.1']
    #allocation8 [shape = 's32[2]{0}', space=sflag, size = 0x8, scoped, tag = 'scoped memory for embedding_forward.1']
    #allocation9 [shape = 'u8[3072]{0}', space=vmem, size = 0xc00, scoped, tag = 'input window, operand 5, single buffered']
    #allocation10 [shape = 's32[1]{0}', space=sflag, size = 0x4, scoped, tag = 'scoped memory for embedding_forward.1']
    #allocation11 [shape = 'u8[3072]{0}', space=vmem, size = 0xc00, scoped, tag = 'input window, operand 6, single buffered']
    #allocation12 [shape = 'u8[49152]{0}', space=vmem, size = 0xc000, scoped, tag = 'output window, operand 0']
    %20 = vsyncpa [#allocation7], 0
    %21 = vsyncpa [#allocation10], 0
    %22 = vsyncpa [#allocation8], 0
    %s23 = scalar_lea.sflag [#allocation8], 1
    %24 = vsyncpa %s23, 0
    loop: start=0, step=1, limit=4
    $region2: #{embedding_forward.1} parent=1 // loop_pre_header
      _
    $region3: #{embedding_forward.1} parent=1 // loop_header
      %s26 = sphi 0, %s30
      %p27 = scmp.ge.s32.totalorder %s26, 4
      %s34 = sphi 0, %s34
      %s36 = sphi 0, %s34
      %s37 = sphi 0, %s36
      %s51 = sphi 0, %s37
      %s57 = sphi 0, %s59
      %s60 = sphi 0, %s57
      %s61 = sphi 0, %s60
      %s77 = sphi 0, %s61
      %s81 = sphi 0, %s81
      %s83 = sphi 0, %s81
      %s84 = sphi 0, %s83
      %s98 = sphi 0, %s84
      %s102 = sphi 0, %s102
      %s104 = sphi 0, %s102
      %s105 = sphi 0, %s104
      %s119 = sphi 0, %s105
      %s123 = sphi 0, %s123
      %s125 = sphi 0, %s123
      %s126 = sphi 0, %s125
      %s140 = sphi 0, %s126
      %s146 = sphi 0, %s148
      %s149 = sphi 0, %s146
      %s150 = sphi 0, %s149
      %s166 = sphi 0, %s150
    $region4: #{embedding_forward.1} parent=1 // loop_header_branch
      %29 = sbr.rel (%p27) target = $region8
    $region5: #{embedding_forward.1} parent=1 // loop_body
      %s31 = ssub.s32 %s26, 1
      %s32 = ssub.s32 %s26, 2
      %s33 = sadd.s32 %s26, 1
      %s35 = sadd.s32 %s34, 1
      %p38 = scmp.eq.s32.totalorder %s26, 1
      %p39 = scmp.ne.s32.totalorder %s34, %s36
      %p40 = scmp.eq.s32.totalorder %s26, 0
      %p41 = por %p39, %p40
      %p42 = scmp.ne.s32.totalorder %s34, %s36
      %p43 = scmp.eq.s32.totalorder %s31, 1
      %p44 = por %p42, %p43
      %p45 = scmp.ne.s32.totalorder %s36, %s37
      %p46 = scmp.eq.s32.totalorder %s31, 0
      %p47 = por %p45, %p46
      %p48 = scmp.ne.s32.totalorder %s36, %s37
      %p49 = scmp.eq.s32.totalorder %s32, 1
      %p50 = por %p48, %p49
      %p52 = scmp.ne.s32.totalorder %s37, %s51
      %p53 = scmp.eq.s32.totalorder %s32, 0
      %p54 = por %p52, %p53
      %s55 = ssub.s32 %s26, %s33
      %p56 = scmp.eq.s32.totalorder %s55, 0
      %s58 = sadd.s32 %s57, 1
      %s59 = scalar_select %p56, %s57, %s58
      %p62 = pneg %p56
      %p63 = scmp.eq.s32.totalorder %s26, 1
      %p64 = por %p62, %p63
      %p65 = scmp.ne.s32.totalorder %s57, %s60
      %p66 = scmp.eq.s32.totalorder %s26, 0
      %p67 = por %p65, %p66
      %p68 = scmp.ne.s32.totalorder %s57, %s60
      %p69 = scmp.eq.s32.totalorder %s31, 1
      %p70 = por %p68, %p69
      %p71 = scmp.ne.s32.totalorder %s60, %s61
      %p72 = scmp.eq.s32.totalorder %s31, 0
      %p73 = por %p71, %p72
      %p74 = scmp.ne.s32.totalorder %s60, %s61
      %p75 = scmp.eq.s32.totalorder %s32, 1
      %p76 = por %p74, %p75
      %p78 = scmp.ne.s32.totalorder %s61, %s77
      %p79 = scmp.eq.s32.totalorder %s32, 0
      %p80 = por %p78, %p79
      %s82 = sadd.s32 %s81, 1
      %p85 = scmp.eq.s32.totalorder %s26, 1
      %p86 = scmp.ne.s32.totalorder %s81, %s83
      %p87 = scmp.eq.s32.totalorder %s26, 0
      %p88 = por %p86, %p87
      %p89 = scmp.ne.s32.totalorder %s81, %s83
      %p90 = scmp.eq.s32.totalorder %s31, 1
      %p91 = por %p89, %p90
      %p92 = scmp.ne.s32.totalorder %s83, %s84
      %p93 = scmp.eq.s32.totalorder %s31, 0
      %p94 = por %p92, %p93
      %p95 = scmp.ne.s32.totalorder %s83, %s84
      %p96 = scmp.eq.s32.totalorder %s32, 1
      %p97 = por %p95, %p96
      %p99 = scmp.ne.s32.totalorder %s84, %s98
      %p100 = scmp.eq.s32.totalorder %s32, 0
      %p101 = por %p99, %p100
      %s103 = sadd.s32 %s102, 1
      %p106 = scmp.eq.s32.totalorder %s26, 1
      %p107 = scmp.ne.s32.totalorder %s102, %s104
      %p108 = scmp.eq.s32.totalorder %s26, 0
      %p109 = por %p107, %p108
      %p110 = scmp.ne.s32.totalorder %s102, %s104
      %p111 = scmp.eq.s32.totalorder %s31, 1
      %p112 = por %p110, %p111
      %p113 = scmp.ne.s32.totalorder %s104, %s105
      %p114 = scmp.eq.s32.totalorder %s31, 0
      %p115 = por %p113, %p114
      %p116 = scmp.ne.s32.totalorder %s104, %s105
      %p117 = scmp.eq.s32.totalorder %s32, 1
      %p118 = por %p116, %p117
      %p120 = scmp.ne.s32.totalorder %s105, %s119
      %p121 = scmp.eq.s32.totalorder %s32, 0
      %p122 = por %p120, %p121
      %s124 = sadd.s32 %s123, 1
      %p127 = scmp.eq.s32.totalorder %s26, 1
      %p128 = scmp.ne.s32.totalorder %s123, %s125
      %p129 = scmp.eq.s32.totalorder %s26, 0
      %p130 = por %p128, %p129
      %p131 = scmp.ne.s32.totalorder %s123, %s125
      %p132 = scmp.eq.s32.totalorder %s31, 1
      %p133 = por %p131, %p132
      %p134 = scmp.ne.s32.totalorder %s125, %s126
      %p135 = scmp.eq.s32.totalorder %s31, 0
      %p136 = por %p134, %p135
      %p137 = scmp.ne.s32.totalorder %s125, %s126
      %p138 = scmp.eq.s32.totalorder %s32, 1
      %p139 = por %p137, %p138
      %p141 = scmp.ne.s32.totalorder %s126, %s140
      %p142 = scmp.eq.s32.totalorder %s32, 0
      %p143 = por %p141, %p142
      %s144 = ssub.s32 %s26, %s33
      %p145 = scmp.eq.s32.totalorder %s144, 0
      %s147 = sadd.s32 %s146, 1
      %s148 = scalar_select %p145, %s146, %s147
      %p151 = pneg %p145
      %p152 = scmp.eq.s32.totalorder %s26, 1
      %p153 = por %p151, %p152
      %p154 = scmp.ne.s32.totalorder %s146, %s149
      %p155 = scmp.eq.s32.totalorder %s26, 0
      %p156 = por %p154, %p155
      %p157 = scmp.ne.s32.totalorder %s146, %s149
      %p158 = scmp.eq.s32.totalorder %s31, 1
      %p159 = por %p157, %p158
      %p160 = scmp.ne.s32.totalorder %s149, %s150
      %p161 = scmp.eq.s32.totalorder %s31, 0
      %p162 = por %p160, %p161
      %p163 = scmp.ne.s32.totalorder %s149, %s150
      %p164 = scmp.eq.s32.totalorder %s32, 1
      %p165 = por %p163, %p164
      %p167 = scmp.ne.s32.totalorder %s150, %s166
      %p168 = scmp.eq.s32.totalorder %s32, 0
      %p169 = por %p167, %p168
      %p170 = scmp.le.s32.totalorder 1, %s26
      %p171 = scmp.lt.s32.totalorder %s26, 3
      %p172 = pnand %p170, %p171
      %p173 = pneg %p172
      // Predicated region
      $region9: #{embedding_forward.1} parent=5 // pred_check
        _
      $region10: #{embedding_forward.1} parent=5 // pred_check_branch
        %175 = sbr.rel (%p172) target = $region12
      $region11: #{embedding_forward.1} parent=5 // pred_region
        %s176 = ssub.s32 %s26, 1
        // Predicated region
        $region13: #{embedding_forward.1} parent=11 // pred_check
          %p177 = pneg %p47
        $region14: #{embedding_forward.1} parent=11 // pred_check_branch
          %179 = sbr.rel (%p177) target = $region16
        $region15: #{embedding_forward.1} parent=11 // pred_region
          _
        $region16: #{embedding_forward.1} parent=11 // pred_fallthru
          _
        // Predicated region
        $region17: #{embedding_forward.1} parent=11 // pred_check
          %p180 = pneg %p94
        $region18: #{embedding_forward.1} parent=11 // pred_check_branch
          %182 = sbr.rel (%p180) target = $region20
        $region19: #{embedding_forward.1} parent=11 // pred_region
          %184 = vsyncadd [#allocation7], 0
          %s186 = sshll.u32 %s4, 4
          %s187 = int_to_ptr.hbm [resolvable:$true] %s186
          %s188 = sshll.u32 [#allocation6], 4
          %s189 = int_to_ptr.vmem [resolvable:$true] %s188
          %191 = dma.hbm_to_vmem [thread:$0]  %s187, 192, %s189, [#allocation7]
        $region20: #{embedding_forward.1} parent=11 // pred_fallthru
          _
        // Predicated region
        $region21: #{embedding_forward.1} parent=11 // pred_check
          %p192 = pneg %p115
        $region22: #{embedding_forward.1} parent=11 // pred_check_branch
          %194 = sbr.rel (%p192) target = $region24
        $region23: #{embedding_forward.1} parent=11 // pred_region
          %196 = vsyncadd [#allocation10], 0
          %s198 = sshll.u32 %s5, 4
          %s199 = int_to_ptr.hbm [resolvable:$true] %s198
          %s200 = sshll.u32 [#allocation9], 4
          %s201 = int_to_ptr.vmem [resolvable:$true] %s200
          %203 = dma.hbm_to_vmem [thread:$0]  %s199, 96, %s201, [#allocation10]
        $region24: #{embedding_forward.1} parent=11 // pred_fallthru
          _
        // Predicated region
        $region25: #{embedding_forward.1} parent=11 // pred_check
          %p204 = pneg %p136
        $region26: #{embedding_forward.1} parent=11 // pred_check_branch
          %206 = sbr.rel (%p204) target = $region28
        $region27: #{embedding_forward.1} parent=11 // pred_region
          %208 = vsyncadd [#allocation10], 0
          %s210 = sshll.u32 %s6, 4
          %s211 = int_to_ptr.hbm [resolvable:$true] %s210
          %s212 = sshll.u32 [#allocation11], 4
          %s213 = int_to_ptr.vmem [resolvable:$true] %s212
          %215 = dma.hbm_to_vmem [thread:$0]  %s211, 96, %s213, [#allocation10]
        $region28: #{embedding_forward.1} parent=11 // pred_fallthru
          _
      $region12: #{embedding_forward.1} parent=5 // pred_fallthru
        _
      %p216 = scmp.lt.s32.totalorder %s26, 2
      // Predicated region
      $region29: #{embedding_forward.1} parent=5 // pred_check
        %p217 = pneg %p216
      $region30: #{embedding_forward.1} parent=5 // pred_check_branch
        %219 = sbr.rel (%p217) target = $region32
      $region31: #{embedding_forward.1} parent=5 // pred_region
        // Predicated region
        $region33: #{embedding_forward.1} parent=31 // pred_check
          %p220 = pneg %p67
        $region34: #{embedding_forward.1} parent=31 // pred_check_branch
          %222 = sbr.rel (%p220) target = $region36
        $region35: #{embedding_forward.1} parent=31 // pred_region
          %s223 = smul.u32 2, %s26
          %p224 = scmp.lt.s32.totalorder %s223, 3
          %s225 = scalar_select %p224, %s223, 3
          %s226 = smul.addr %s225, 8
          %s227 = scalar_lea.vmem %s3, %s226
          %s228 = smul.u32 2, %s26
        $region36: #{embedding_forward.1} parent=31 // pred_fallthru
          _
      $region32: #{embedding_forward.1} parent=5 // pred_fallthru
        _
      %p229 = scmp.le.s32.totalorder 1, %s26
      %p230 = scmp.lt.s32.totalorder %s26, 3
      %p231 = pnand %p229, %p230
      %p232 = pneg %p231
      // Predicated region
      $region37: #{embedding_forward.1} parent=5 // pred_check
        _
      $region38: #{embedding_forward.1} parent=5 // pred_check_branch
        %234 = sbr.rel (%p231) target = $region40
      $region39: #{embedding_forward.1} parent=5 // pred_region
        %s235 = ssub.s32 %s26, 1
        // Predicated region
        $region41: #{embedding_forward.1} parent=39 // pred_check
          %p236 = pneg %p94
        $region42: #{embedding_forward.1} parent=39 // pred_check_branch
          %238 = sbr.rel (%p236) target = $region44
        $region43: #{embedding_forward.1} parent=39 // pred_region
          %240 = dma.done [#allocation7], 192
        $region44: #{embedding_forward.1} parent=39 // pred_fallthru
          _
        // Predicated region
        $region45: #{embedding_forward.1} parent=39 // pred_check
          %p241 = pneg %p115
        $region46: #{embedding_forward.1} parent=39 // pred_check_branch
          %243 = sbr.rel (%p241) target = $region48
        $region47: #{embedding_forward.1} parent=39 // pred_region
          %245 = dma.done [#allocation10], 96
        $region48: #{embedding_forward.1} parent=39 // pred_fallthru
          _
        // Predicated region
        $region49: #{embedding_forward.1} parent=39 // pred_check
          %p246 = pneg %p136
        $region50: #{embedding_forward.1} parent=39 // pred_check_branch
          %248 = sbr.rel (%p246) target = $region52
        $region51: #{embedding_forward.1} parent=39 // pred_region
          %250 = dma.done [#allocation10], 96
        $region52: #{embedding_forward.1} parent=39 // pred_fallthru
          _
        %p251 = pneg %p47
        %p252 = pneg %p44
        %s253 = smul.u32 2, %s31
        %p254 = scmp.lt.s32.totalorder %s253, 3
        %s255 = scalar_select %p254, %s253, 3
        %s256 = smul.addr %s255, 8
        %s257 = scalar_lea.vmem %s3, %s256
        %p258 = pneg %p73
        %p259 = pneg %p70
        %p260 = pneg %p94
        %p261 = pneg %p91
        %p262 = pneg %p115
        %p263 = pneg %p112
        %p264 = pneg %p136
        %p265 = pneg %p133
        %p266 = pneg %p162
        %p267 = pneg %p159
        %s268 = sand.u32 %s149, 1
        %s269 = scalar_lea.sflag [#allocation8], %s268
        %s270 = sand.u32 %s149, 1
        %s271 = smul.addr %s270, 48
        %s272 = scalar_lea.vmem [#allocation12], %s271
        %s273 = smul.u32 2, %s31
        %p274 = scmp.lt.s32.totalorder %s273, 3
        %s275 = scalar_select %p274, %s273, 3
        %s276 = smul.addr %s275, 8
        %s277 = scalar_lea.vmem %s3, %s276
        %s278 = smul.u32 2, %s31
        %s279 = smul.u32 2, %s31
        %s280 = smul.u32 %s31, 16
        loop: start=0, step=1, limit=16
        $region53: #{embedding_forward.1} parent=39 // loop_pre_header
          _
        $region54: #{embedding_forward.1} parent=39 // loop_header
          %s282 = sphi 0, %s286
          %p283 = scmp.ge.s32.totalorder %s282, 16
        $region55: #{embedding_forward.1} parent=39 // loop_header_branch
          %285 = sbr.rel (%p283) target = $region59
        $region56: #{embedding_forward.1} parent=39 // loop_body
          %s287 = sadd.s32 %s280, %s282
          %s288 = sld [smem:[#allocation5 + %s287]]
          %s289 = sshrl.u32 %s288, 3
          %s290 = sand.u32 %s288, 7
          %s291 = smul.u32 %s289, 48
          %s292 = sadd.s32 %s290, %s291
          %s293 = scalar_lea.hbm %s1, %s292
          %s294 = sshrl.u32 %s282, 3
          %s295 = sand.u32 %s282, 7
          %s296 = smul.u32 %s294, 48
          %s297 = sadd.s32 %s295, %s296
          %s298 = scalar_lea.vmem [#allocation2], %s297
          %s299 = sshll.u32 %s293, 4
          %s300 = int_to_ptr.hbm [resolvable:$true] %s299
          %s301 = sshll.u32 %s298, 4
          %s302 = int_to_ptr.vmem [resolvable:$true] %s301
          %306 = dma.hbm_to_vmem [thread:$0]  %s300, 96, %s302, [#allocation3], 128, 128, 1
        $region57: #{embedding_forward.1} parent=39 // loop_footer
          %s286 = sadd.s32 1, %s282
        $region58: #{embedding_forward.1} parent=39 // loop_footer_branch
          %281 = sbr.rel target = $region54
        $region59: #{embedding_forward.1} parent=39 // loop_exit
          _
        loop: start=0, step=1, limit=16
        $region60: #{embedding_forward.1} parent=39 // loop_pre_header
          _
        $region61: #{embedding_forward.1} parent=39 // loop_header
          %s308 = sphi 0, %s312
          %p309 = scmp.ge.s32.totalorder %s308, 16
        $region62: #{embedding_forward.1} parent=39 // loop_header_branch
          %311 = sbr.rel (%p309) target = $region66
        $region63: #{embedding_forward.1} parent=39 // loop_body
          %s313 = sadd.s32 %s280, %s308
          %s314 = sld [smem:[#allocation5 + %s313]]
          %s315 = smul.u32 1, 6
          %s316 = sshll.u32 %s315, 4
          %317 = dma.done [#allocation3], %s316
        $region64: #{embedding_forward.1} parent=39 // loop_footer
          %s312 = sadd.s32 1, %s308
        $region65: #{embedding_forward.1} parent=39 // loop_footer_branch
          %307 = sbr.rel target = $region61
        $region66: #{embedding_forward.1} parent=39 // loop_exit
          _
        %v318 = vld [vmem:[#allocation2] sm:$0xff]
        %v319 = vld [vmem:[#allocation2 + $0x8] sm:$0xff]
        %v320 = vld [vmem:[#allocation2 + $0x10] sm:$0xff]
        %v321 = vld [vmem:[#allocation2 + $0x18] sm:$0xff]
        %v322 = vld [vmem:[#allocation2 + $0x20] sm:$0xff]
        %v323 = vld [vmem:[#allocation2 + $0x28] sm:$0xff]
        %v324 = vld [vmem:[#allocation2 + $0x30] sm:$0xff]
        %v325 = vld [vmem:[#allocation2 + $0x38] sm:$0xff]
        %v326 = vld [vmem:[#allocation2 + $0x40] sm:$0xff]
        %v327 = vld [vmem:[#allocation2 + $0x48] sm:$0xff]
        %v328 = vld [vmem:[#allocation2 + $0x50] sm:$0xff]
        %v329 = vld [vmem:[#allocation2 + $0x58] sm:$0xff]
        %v330 = vld [vmem:[%s2] sm:$0xff]
        %v331 = vld [vmem:[%s2 + $0x8] sm:$0xff]
        %v332 = vld [vmem:[%s2 + $0x10] sm:$0xff]
        %v333 = vld [vmem:[%s2 + $0x18] sm:$0xff]
        %v334 = vld [vmem:[%s2 + $0x20] sm:$0xff]
        %v335 = vld [vmem:[%s2 + $0x28] sm:$0xff]
        %v336 = vld [vmem:[%s2 + $0x30] sm:$0xff]
        %v337 = vld [vmem:[%s2 + $0x38] sm:$0xff]
        %v338 = vld [vmem:[%s2 + $0x40] sm:$0xff]
        %v339 = vld [vmem:[%s2 + $0x48] sm:$0xff]
        %v340 = vld [vmem:[%s2 + $0x50] sm:$0xff]
        %v341 = vld [vmem:[%s2 + $0x58] sm:$0xff]
        %v342 = vld [vmem:[#allocation6] sm:$0xff]
        %v343 = vld [vmem:[#allocation6 + $0x8] sm:$0xf]
        %v344 = vld [vmem:[%s277] sm:$0xff]
        %v345 = vld [vmem:[%s277 + $0x8] sm:$0xff]
        %vm346 = vcmp.gt.s32.totalorder %v344, 0
        %vm347 = vcmp.gt.s32.totalorder %v345, 0
        %v348 = vsel %vm346, 1, 0
        %v349 = vsel %vm347, 1, 0
        %350 = vset.pattern.permute.xlu0 0
        %351 = vperm.xlu0 %350, %v348
        %v352 = vpop.permute.xlu0 %351
        %353 = vset.pattern.permute.xlu0 0
        %354 = vperm.xlu0 %353, %v349
        %v355 = vpop.permute.xlu0 %354
        %vm356 = vcmp.eq.s32.totalorder %v352, 1
        %vm357 = vcmp.eq.s32.totalorder %v355, 1
        %v360 = vperm.slane %v342, 1
        %v361 = vperm.slane %v342, 3
        %v362 = vperm.slane %v342, 5
        %v363 = vperm.slane %v342, 7
        %v364 = vperm.slane %v343, 1
        %v365 = vperm.slane %v343, 3
        %v372 = vperm.slane %v360, 1
        %v373 = vperm.slane %v361, 1
        %v374 = vperm.slane %v362, 1
        %v375 = vperm.slane %v363, 1
        %v376 = vperm.slane %v364, 1
        %v377 = vperm.slane %v365, 1
        %v378 = vperm.slane %v342, 0
        %v379 = vperm.slane %v342, 2
        %v380 = vperm.slane %v342, 4
        %v381 = vperm.slane %v342, 6
        %v382 = vperm.slane %v343, 0
        %v383 = vperm.slane %v343, 2
        %v390 = vperm.slane %v378, 0
        %v391 = vperm.slane %v379, 0
        %v392 = vperm.slane %v380, 0
        %v393 = vperm.slane %v381, 0
        %v394 = vperm.slane %v382, 0
        %v395 = vperm.slane %v383, 0
        %v396 = vsel %vm356, %v372, %v390
        %v397 = vsel %vm356, %v373, %v391
        %v398 = vsel %vm356, %v374, %v392
        %v399 = vsel %vm356, %v375, %v393
        %v400 = vsel %vm356, %v376, %v394
        %v401 = vsel %vm356, %v377, %v395
        %v402 = vsel %vm357, %v372, %v390
        %v403 = vsel %vm357, %v373, %v391
        %v404 = vsel %vm357, %v374, %v392
        %v405 = vsel %vm357, %v375, %v393
        %v406 = vsel %vm357, %v376, %v394
        %v407 = vsel %vm357, %v377, %v395
        %v408 = vadd.f32 %v318, %v330
        %v409 = vadd.f32 %v319, %v331
        %v410 = vadd.f32 %v320, %v332
        %v411 = vadd.f32 %v321, %v333
        %v412 = vadd.f32 %v322, %v334
        %v413 = vadd.f32 %v323, %v335
        %v414 = vadd.f32 %v324, %v336
        %v415 = vadd.f32 %v325, %v337
        %v416 = vadd.f32 %v326, %v338
        %v417 = vadd.f32 %v327, %v339
        %v418 = vadd.f32 %v328, %v340
        %v419 = vadd.f32 %v329, %v341
        %v420 = vadd.f32 %v408, %v396
        %v421 = vadd.f32 %v409, %v397
        %v422 = vadd.f32 %v410, %v398
        %v423 = vadd.f32 %v411, %v399
        %v424 = vadd.f32 %v412, %v400
        %v425 = vadd.f32 %v413, %v401
        %v426 = vadd.f32 %v414, %v402
        %v427 = vadd.f32 %v415, %v403
        %v428 = vadd.f32 %v416, %v404
        %v429 = vadd.f32 %v417, %v405
        %v430 = vadd.f32 %v418, %v406
        %v431 = vadd.f32 %v419, %v407
        %v432 = vadd.f32 %v420, %v421
        %v433 = vadd.f32 %v432, %v422
        %v434 = vadd.f32 %v433, %v423
        %v435 = vadd.f32 %v434, %v424
        %v436 = vadd.f32 %v435, %v425
        %437 = vadd.xlane.f32.xlu0 %v436
        %v438 = vpop.xlane.xlu0 %437
        %v439 = vadd.f32 %v426, %v427
        %v440 = vadd.f32 %v439, %v428
        %v441 = vadd.f32 %v440, %v429
        %v442 = vadd.f32 %v441, %v430
        %v443 = vadd.f32 %v442, %v431
        %444 = vadd.xlane.f32.xlu0 %v443
        %v445 = vpop.xlane.xlu0 %444
        %v446 = vrcp.pop 768.0
        %v447 = vmul.f32 768.0, %v446
        %v448 = vsub.f32 1.0, %v447
        %v449 = vmul.f32 %v446, %v448
        %v450 = vadd.f32 %v446, %v449
        %vm451 = vweird.f32 %v446
        %v452 = vsel %vm451, %v446, %v450
        %v453 = vmul.f32 %v438, %v452
        %v454 = vmul.f32 %v445, %v452
        %v455 = vmul.f32 %v420, %v420
        %v456 = vmul.f32 %v421, %v421
        %v457 = vmul.f32 %v422, %v422
        %v458 = vmul.f32 %v423, %v423
        %v459 = vmul.f32 %v424, %v424
        %v460 = vmul.f32 %v425, %v425
        %v461 = vmul.f32 %v426, %v426
        %v462 = vmul.f32 %v427, %v427
        %v463 = vmul.f32 %v428, %v428
        %v464 = vmul.f32 %v429, %v429
        %v465 = vmul.f32 %v430, %v430
        %v466 = vmul.f32 %v431, %v431
        %v467 = vadd.f32 %v455, %v456
        %v468 = vadd.f32 %v467, %v457
        %v469 = vadd.f32 %v468, %v458
        %v470 = vadd.f32 %v469, %v459
        %v471 = vadd.f32 %v470, %v460
        %472 = vadd.xlane.f32.xlu0 %v471
        %v473 = vpop.xlane.xlu0 %472
        %v474 = vadd.f32 %v461, %v462
        %v475 = vadd.f32 %v474, %v463
        %v476 = vadd.f32 %v475, %v464
        %v477 = vadd.f32 %v476, %v465
        %v478 = vadd.f32 %v477, %v466
        %479 = vadd.xlane.f32.xlu0 %v478
        %v480 = vpop.xlane.xlu0 %479
        %v481 = vmul.f32 %v473, %v452
        %v482 = vmul.f32 %v480, %v452
        %v483 = vmul.f32 %v453, %v453
        %v484 = vmul.f32 %v454, %v454
        %v485 = vsub.f32 %v481, %v483
        %v486 = vsub.f32 %v482, %v484
        %v487 = vmax.f32 %v485, 0.0
        %v488 = vmax.f32 %v486, 0.0
        %v489 = vsub.f32 %v420, %v453
        %v490 = vsub.f32 %v421, %v453
        %v491 = vsub.f32 %v422, %v453
        %v492 = vsub.f32 %v423, %v453
        %v493 = vsub.f32 %v424, %v453
        %v494 = vsub.f32 %v425, %v453
        %v495 = vsub.f32 %v426, %v454
        %v496 = vsub.f32 %v427, %v454
        %v497 = vsub.f32 %v428, %v454
        %v498 = vsub.f32 %v429, %v454
        %v499 = vsub.f32 %v430, %v454
        %v500 = vsub.f32 %v431, %v454
        %v501 = vadd.f32 %v487, 1e-05
        %v502 = vadd.f32 %v488, 1e-05
        %v503 = vrsqrt.pop %v501
        %v504 = vmul.f32 %v503, %v501
        %v505 = vmul.f32 %v504, %v503
        %v506 = vmul.f32 0.5, %v505
        %v507 = vsub.f32 1.5, %v506
        %v508 = vmul.f32 %v503, %v507
        %vm509 = vweird.f32 %v501
        %vm510 = vweird.f32 %v503
        %vm511 = vmor %vm509, %vm510
        %v512 = vsel %vm511, %v503, %v508
        %v513 = vrsqrt.pop %v502
        %v514 = vmul.f32 %v513, %v502
        %v515 = vmul.f32 %v514, %v513
        %v516 = vmul.f32 0.5, %v515
        %v517 = vsub.f32 1.5, %v516
        %v518 = vmul.f32 %v513, %v517
        %vm519 = vweird.f32 %v502
        %vm520 = vweird.f32 %v513
        %vm521 = vmor %vm519, %vm520
        %v522 = vsel %vm521, %v513, %v518
        %v523 = vmul.f32 %v489, %v512
        %v524 = vmul.f32 %v490, %v512
        %v525 = vmul.f32 %v491, %v512
        %v526 = vmul.f32 %v492, %v512
        %v527 = vmul.f32 %v493, %v512
        %v528 = vmul.f32 %v494, %v512
        %v529 = vmul.f32 %v495, %v522
        %v530 = vmul.f32 %v496, %v522
        %v531 = vmul.f32 %v497, %v522
        %v532 = vmul.f32 %v498, %v522
        %v533 = vmul.f32 %v499, %v522
        %v534 = vmul.f32 %v500, %v522
        %v535 = vld [vmem:[#allocation9] sm:$0x3f]
        %v537 = vperm.slane %v535, 0
        %v538 = vperm.slane %v535, 1
        %v539 = vperm.slane %v535, 2
        %v540 = vperm.slane %v535, 3
        %v541 = vperm.slane %v535, 4
        %v542 = vperm.slane %v535, 5
        %v549 = vmul.f32 %v523, %v537
        %v550 = vmul.f32 %v524, %v538
        %v551 = vmul.f32 %v525, %v539
        %v552 = vmul.f32 %v526, %v540
        %v553 = vmul.f32 %v527, %v541
        %v554 = vmul.f32 %v528, %v542
        %v555 = vmul.f32 %v529, %v537
        %v556 = vmul.f32 %v530, %v538
        %v557 = vmul.f32 %v531, %v539
        %v558 = vmul.f32 %v532, %v540
        %v559 = vmul.f32 %v533, %v541
        %v560 = vmul.f32 %v534, %v542
        %v561 = vld [vmem:[#allocation11] sm:$0x3f]
        %v563 = vperm.slane %v561, 0
        %v564 = vperm.slane %v561, 1
        %v565 = vperm.slane %v561, 2
        %v566 = vperm.slane %v561, 3
        %v567 = vperm.slane %v561, 4
        %v568 = vperm.slane %v561, 5
        %v575 = vadd.f32 %v549, %v563
        %v576 = vadd.f32 %v550, %v564
        %v577 = vadd.f32 %v551, %v565
        %v578 = vadd.f32 %v552, %v566
        %v579 = vadd.f32 %v553, %v567
        %v580 = vadd.f32 %v554, %v568
        %v581 = vadd.f32 %v555, %v563
        %v582 = vadd.f32 %v556, %v564
        %v583 = vadd.f32 %v557, %v565
        %v584 = vadd.f32 %v558, %v566
        %v585 = vadd.f32 %v559, %v567
        %v586 = vadd.f32 %v560, %v568
        %v587 = vpack.c.bf16 %v576, %v575
        %v588 = vpack.c.bf16 %v578, %v577
        %v589 = vpack.c.bf16 %v580, %v579
        %v590 = vpack.c.bf16 %v582, %v581
        %v591 = vpack.c.bf16 %v584, %v583
        %v592 = vpack.c.bf16 %v586, %v585
        %593 = vst [vmem:[%s272] sm:$0xff] %v587
        %594 = vst [vmem:[%s272 + $0x8] sm:$0xff] %v588
        %595 = vst [vmem:[%s272 + $0x10] sm:$0xff] %v589
        %596 = vst [vmem:[%s272 + $0x18] sm:$0xff] %v590
        %597 = vst [vmem:[%s272 + $0x20] sm:$0xff] %v591
        %598 = vst [vmem:[%s272 + $0x28] sm:$0xff] %v592
        %s599 = sand.u32 %s149, 1
        %s600 = scalar_lea.sflag [#allocation8], %s599
        %s601 = sand.u32 %s149, 1
        %s602 = smul.addr %s601, 48
        %s603 = scalar_lea.vmem [#allocation12], %s602
        // Predicated region
        $region67: #{embedding_forward.1} parent=39 // pred_check
          %p604 = pneg %p159
        $region68: #{embedding_forward.1} parent=39 // pred_check_branch
          %606 = sbr.rel (%p604) target = $region70
        $region69: #{embedding_forward.1} parent=39 // pred_region
          %s607 = smul.u32 2, %s31
          %609 = vsyncadd %s600, 0
          %s610 = smul.addr %s607, 6
          %s611 = smul.addr %s610, 4
          %s612 = scalar_lea.hbm %s7, %s611
          %s613 = sshll.u32 %s603, 4
          %s614 = int_to_ptr.vmem [resolvable:$true] %s613
          %s615 = sshll.u32 %s612, 4
          %s616 = int_to_ptr.hbm [resolvable:$true] %s615
          %621 = dma.vmem_to_hbm [thread:$0]  %s614, 768, %s616, %s600, 384, 384, 24
        $region70: #{embedding_forward.1} parent=39 // pred_fallthru
          _
      $region40: #{embedding_forward.1} parent=5 // pred_fallthru
        _
      %p622 = scmp.le.s32.totalorder 2, %s26
      // Predicated region
      $region71: #{embedding_forward.1} parent=5 // pred_check
        %p623 = pneg %p622
      $region72: #{embedding_forward.1} parent=5 // pred_check_branch
        %625 = sbr.rel (%p623) target = $region74
      $region73: #{embedding_forward.1} parent=5 // pred_region
        %s626 = ssub.s32 %s26, 2
        // Predicated region
        $region75: #{embedding_forward.1} parent=73 // pred_check
          %p627 = pneg %p165
        $region76: #{embedding_forward.1} parent=73 // pred_check_branch
          %629 = sbr.rel (%p627) target = $region78
        $region77: #{embedding_forward.1} parent=73 // pred_region
          %s630 = sand.u32 %s150, 1
          %s631 = scalar_lea.sflag [#allocation8], %s630
          %s632 = sand.u32 %s150, 1
          %s633 = smul.addr %s632, 48
          %s634 = scalar_lea.vmem [#allocation12], %s633
          %636 = dma.done %s631, 768
        $region78: #{embedding_forward.1} parent=73 // pred_fallthru
          _
      $region74: #{embedding_forward.1} parent=5 // pred_fallthru
        _
    $region6: #{embedding_forward.1} parent=1 // loop_footer
      %s30 = sadd.s32 1, %s26
    $region7: #{embedding_forward.1} parent=1 // loop_footer_branch
      %25 = sbr.rel target = $region3
    $region8: #{embedding_forward.1} parent=1 // loop_exit
      _
    %637 = vsyncpa [#allocation7], 1
    %s638 = scalar_lea.sflag [#allocation7], 1
    %639 = vsyncpa %s638, 1
    %640 = vsyncpa [#allocation10], 1
    %641 = vsyncpa [#allocation8], 1
    %s642 = scalar_lea.sflag [#allocation8], 1
    %643 = vsyncpa %s642, 1
  %644 = vsyncmov [#allocation3]
  %s645 = vpop.sfrf %644
  %p646 = scmp.eq.s32.totalorder %s645, 0
  %p647 = pneg %p646
  %649 = shalt.err (%p647)

</llo_original>
